<compile_context>
chip_gen: v7x
topology: tpu7x:2x2x1
jax: 0.10.0
libtpu: 0.0.40
codegen_flags: <defaults>
</compile_context>

<pallas_src>
import math

import jax
import jax.numpy as jnp
from jax.experimental import pallas as pl
from jax.experimental.pallas import tpu as pltpu


# ---------------------------------------------------------------------------
# Kernel
# ---------------------------------------------------------------------------
def _vproj_kernel(x_ref, w_ref, b_ref, o_ref):
    # One MXU matmul on the full row tile, f32 accumulation, lane-dense store.
    acc = jnp.dot(x_ref[...], w_ref[...], preferred_element_type=jnp.float32)
    o_ref[...] = (acc + b_ref[...]).astype(o_ref.dtype)


# ---------------------------------------------------------------------------
# Tiling helpers
# ---------------------------------------------------------------------------
# 1024 rows x 256 cols f32 = 1 MiB per block.  Double-buffered input + output
# plus the resident (double-buffered) D x D weight is ~4.5 MiB at D=256 --
# comfortably under the 16 MiB v5e scoped-VMEM default, and rows > 1024 always
# yield >= 2 grid steps so both v7x TensorCores get work.
_MAX_TILE_ROWS = 1024


def _round_up(x, m):
    return ((x + m - 1) // m) * m


def _pick_tile_rows(rows):
    rows8 = _round_up(rows, 8)
    return rows8 if rows8 <= _MAX_TILE_ROWS else _MAX_TILE_ROWS


# ---------------------------------------------------------------------------
# One-time parameter layout plumbing (hoisted out of the forward path)
# ---------------------------------------------------------------------------
def prepare_value_projection(params, *, num_heads):
    """Fold the (H, hd) -> (hd, H) head transpose into the output-column order
    of Wv^T / bv so the kernel writes the final layout directly.  Call ONCE at
    parameter-setup time; the per-call forward is then a single pallas_call.

      out[:, d*H + h] = (v @ Wv.T + bv)[:, h*hd + d]
    """
    wv = jnp.asarray(params["wv"], jnp.float32)
    bv = jnp.asarray(params["bv"], jnp.float32)
    D = wv.shape[0]
    assert D % num_heads == 0, "num_heads must divide the model dimension"
    hd = D // num_heads
    w_eff = jnp.transpose(wv.T.reshape(D, num_heads, hd), (0, 2, 1)).reshape(D, D)
    b_eff = bv.reshape(num_heads, hd).T.reshape(1, D)
    return {"w_eff": w_eff, "b_eff": b_eff}


# ---------------------------------------------------------------------------
# Forward
# ---------------------------------------------------------------------------
def attention_forward(q, k, v, mask, inv_scale_factor, prepared, *,
                      dropout_p=1.0, training=False, min_rows_for_pallas=0):
    """q, k, v: (B, T, 1, 1, D) float32.

    `mask` is unused (matches the PyTorch forward).  `inv_scale_factor`
    divides the logits before a size-1 softmax, so it cannot change the
    output and is ignored.  Only the (pre-permuted) value projection is read;
    Wq/Wk/bq/bk are dead compute for this module's shapes (see header).
    Eval-mode contract: dropout is identity.  training + p==1 -> zeros.
    """
    del mask              # unused by the PyTorch forward
    del inv_scale_factor  # no-op: divides logits of a size-1 softmax

    B, T = q.shape[0], q.shape[1]
    D = q.shape[-1]
    rows = B * T

    if training:
        if dropout_p >= 1.0:
            # PyTorch nn.Dropout(p=1) in training mode zeros everything.
            return jnp.zeros((B, T, D), q.dtype)
        # TODO(synk): training-mode dropout with 0 < p < 1 needs RNG state;
        # this implementation covers the eval-mode (identity) contract.

    w_eff = prepared["w_eff"]
    b_eff = prepared["b_eff"]
    v2 = v.reshape(rows, D)                                    # lane-dense rows

    if rows < min_rows_for_pallas:
        # Tiny-problem fallback: fixed pallas_call/DMA setup cost dominates.
        out2 = (v2 @ w_eff + b_eff).astype(q.dtype)
        return out2.reshape(B, T, D)

    tile_rows = _pick_tile_rows(rows)

    # Keep the row count a multiple of 8 so every block is well-formed
    # (no-op for aligned sizes such as this harness).
    rows_p = _round_up(rows, 8)
    if rows_p != rows:
        v2 = jnp.pad(v2, ((0, rows_p - rows), (0, 0)))

    grid = (pl.cdiv(rows_p, tile_rows),)

    # VMEM budget: double-buffered input+output tiles + weight + bias.
    vmem_est = 4 * tile_rows * D * 4 + 2 * D * D * 4 + 2 * D * 4
    vmem_limit = int(vmem_est * 2) if vmem_est > (12 << 20) else None

    out2 = pl.pallas_call(
        _vproj_kernel,
        out_shape=jax.ShapeDtypeStruct((rows_p, D), jnp.float32),
        grid=grid,
        in_specs=[
            pl.BlockSpec((tile_rows, D), lambda i: (i, 0)),    # v rows
            pl.BlockSpec((D, D), lambda i: (0, 0)),            # permuted Wv^T (resident)
            pl.BlockSpec((1, D), lambda i: (0, 0)),            # permuted bias
        ],
        out_specs=pl.BlockSpec((tile_rows, D), lambda i: (i, 0)),
        compiler_params=pltpu.CompilerParams(
            dimension_semantics=("parallel",),
            vmem_limit_bytes=vmem_limit),
    )(v2, w_eff, b_eff)

    if rows_p != rows:
        out2 = out2[:rows]
    # Output is already in the final (B, T, hd*H) layout; plain reshape only.
    return out2.reshape(B, T, D)


# ---------------------------------------------------------------------------
# Pure-JAX mirror of the full PyTorch forward (eval mode: dropout = identity)
# ---------------------------------------------------------------------------
def reference_forward(q, k, v, inv_scale_factor, params, *, num_heads):
    B, T = q.shape[0], q.shape[1]
    D = q.shape[-1]
    hd = D // num_heads

    def lin(x, w, b):
        return x @ w.T + b

    qp = lin(q, params["wq"], params["bq"]).reshape(B, T, 1, num_heads, hd)
    kp = lin(k, params["wk"], params["bk"]).reshape(B, T, 1, num_heads, hd)
    vp = lin(v, params["wv"], params["bv"]).reshape(B, T, 1, num_heads, hd)
    qp = jnp.swapaxes(qp, 2, 3) / math.sqrt(hd)                # (B,T,H,1,hd)
    kp = jnp.swapaxes(kp, 2, 3)
    vp = jnp.swapaxes(vp, 2, 3)

    s = qp @ jnp.swapaxes(kp, -2, -1)                          # (B,T,H,1,1)
    s = s / inv_scale_factor
    p = jax.nn.softmax(s.astype(jnp.float32), axis=-1)         # == 1
    o = p @ vp                                                 # (B,T,H,1,hd)
    o = o.reshape(B, T, num_heads, hd)
    o = jnp.swapaxes(o, 2, 3)                                  # (B,T,hd,H)
    return o.reshape(B, T, D)


if __name__ == "__main__":
    # Small shapes consistent with the module / test harness:
    # inputs (B, T, 1, 1, D) with D = 256; use 4 heads so the head reorder is
    # non-trivial (dim_model must equal the input feature width for the views
    # in the PyTorch forward to be valid).
    B, T = 2, 20
    dim_model = 256
    num_heads = 4

    key = jax.random.PRNGKey(0)
    kq, kk, kv, kwq, kwk, kwv, kbq, kbk, kbv = jax.random.split(key, 9)

    q = jax.random.normal(kq, (B, T, 1, 1, dim_model), dtype=jnp.float32)
    k = jax.random.normal(kk, (B, T, 1, 1, dim_model), dtype=jnp.float32)
    v = jax.random.normal(kv, (B, T, 1, 1, dim_model), dtype=jnp.float32)
    mask = jnp.zeros((1, 1, 1, 1), dtype=jnp.float32)             # unused
    inv_scale_factor = jnp.ones((1, 1, 1, 1), dtype=jnp.float32)

    bound = 1.0 / math.sqrt(dim_model)
    params = {
        "wq": jax.random.uniform(kwq, (dim_model, dim_model), jnp.float32, -bound, bound),
        "wk": jax.random.uniform(kwk, (dim_model, dim_model), jnp.float32, -bound, bound),
        "wv": jax.random.uniform(kwv, (dim_model, dim_model), jnp.float32, -bound, bound),
        "bq": jax.random.uniform(kbq, (dim_model,), jnp.float32, -bound, bound),
        "bk": jax.random.uniform(kbk, (dim_model,), jnp.float32, -bound, bound),
        "bv": jax.random.uniform(kbv, (dim_model,), jnp.float32, -bound, bound),
    }

    # One-time parameter layout plumbing (hoisted out of the forward path).
    prepared = jax.tree_util.tree_map(
        jax.block_until_ready,
        prepare_value_projection(params, num_heads=num_heads))

    out = attention_forward(q, k, v, mask, inv_scale_factor, prepared)
    out = jax.block_until_ready(out)

    ref = reference_forward(q, k, v, inv_scale_factor, params, num_heads=num_heads)
    assert out.shape == (B, T, dim_model)
    # Tolerance covers MXU vs XLA f32-matmul accumulation differences.
    assert jnp.allclose(out, ref, atol=1e-3, rtol=1e-3), "mismatch vs pure-JAX reference"

    print("KERNEL_OK")
</pallas_src>

<mosaic_0001>
module attributes {stable_mosaic.version = 11 : i64} {
  func.func @_vproj_kernel(%arg0: i32, %arg1: memref<40x256xf32, #tpu.memory_space<vmem>>, %arg2: memref<256x256xf32, #tpu.memory_space<vmem>>, %arg3: memref<1x256xf32, #tpu.memory_space<vmem>>, %arg4: memref<40x256xf32, #tpu.memory_space<vmem>>) attributes {dimension_semantics = [#tpu.dimension_semantics<parallel>], iteration_bounds = array<i64: 1>, scalar_prefetch = 0 : i64, scratch_operands = 0 : i64, tpu.core_type = #tpu.core_type<tc>, window_params = [{transform_indices = @transform_0, window_bounds = array<i64: 40, 256>}, {pipeline_mode = #tpu.pipeline_mode<synchronous>, transform_indices = @transform_1, window_bounds = array<i64: 256, 256>}, {pipeline_mode = #tpu.pipeline_mode<synchronous>, transform_indices = @transform_2, window_bounds = array<i64: 1, 256>}, {transform_indices = @transform_3, window_bounds = array<i64: 40, 256>}]} {
    %c0 = arith.constant 0 : index
    %c0_0 = arith.constant 0 : index
    %0 = vector.load %arg1[%c0, %c0_0] : memref<40x256xf32, #tpu.memory_space<vmem>>, vector<40x256xf32>
    %c0_1 = arith.constant 0 : index
    %c0_2 = arith.constant 0 : index
    %1 = vector.load %arg2[%c0_1, %c0_2] : memref<256x256xf32, #tpu.memory_space<vmem>>, vector<256x256xf32>
    %cst = arith.constant dense<0.000000e+00> : vector<40x256xf32>
    %2 = tpu.matmul %0, %1, %cst {dimension_numbers = #tpu.dot_dimension_numbers<[1], [0], [0], [1], [0, 0, 1, 1], [], []>} : vector<40x256xf32>, vector<256x256xf32>, vector<40x256xf32> -> vector<40x256xf32>
    %c0_3 = arith.constant 0 : index
    %c0_4 = arith.constant 0 : index
    %3 = vector.load %arg3[%c0_3, %c0_4] : memref<1x256xf32, #tpu.memory_space<vmem>>, vector<1x256xf32>
    %4 = vector.broadcast %3 : vector<1x256xf32> to vector<40x256xf32>
    %5 = arith.addf %2, %4 : vector<40x256xf32>
    %c0_5 = arith.constant 0 : index
    %c0_6 = arith.constant 0 : index
    %6 = vector.load %arg4[%c0_5, %c0_6] : memref<40x256xf32, #tpu.memory_space<vmem>>, vector<40x256xf32>
    tpu.vector_store %arg4[%c0_5, %c0_6], %5 {strides = array<i32>} : memref<40x256xf32, #tpu.memory_space<vmem>>, vector<40x256xf32>,
    return
  }
  func.func @transform_0(%arg0: i32) -> (i32, i32) {
    %c0_i32 = arith.constant 0 : i32
    %c0_i32_0 = arith.constant 0 : i32
    return %arg0, %c0_i32 : i32, i32
  }
  func.func @transform_1(%arg0: i32) -> (i32, i32) {
    %c0_i32 = arith.constant 0 : i32
    %c0_i32_0 = arith.constant 0 : i32
    %c0_i32_1 = arith.constant 0 : i32
    return %c0_i32, %c0_i32_0 : i32, i32
  }
  func.func @transform_2(%arg0: i32) -> (i32, i32) {
    %c0_i32 = arith.constant 0 : i32
    %c0_i32_0 = arith.constant 0 : i32
    %c0_i32_1 = arith.constant 0 : i32
    return %c0_i32, %c0_i32_0 : i32, i32
  }
  func.func @transform_3(%arg0: i32) -> (i32, i32) {
    %c0_i32 = arith.constant 0 : i32
    %c0_i32_0 = arith.constant 0 : i32
    return %arg0, %c0_i32 : i32, i32
  }
}

</mosaic_0001>

<llo_original>
// kernel: tpu_custom_call.1
$region0: #{tpu_custom_call.1}
  #allocation0 [shape = 'u32[]', space=smem, size = 0x4, offset = 0x4, fixed_abs, tag = 'smem constant byte address 0x4 - core index']
  #allocation1 [shape = 'u32[144,128]{1,0:T(1,128)}', space=vmem, size = 0x12000, scoped, tag = 'internal scratch']
  %s0 = inlined_call_operand.hbm [shape: f32[40,256], index: 0, kind: input, shape index: {}]
  %s1 = inlined_call_operand.hbm [shape: f32[256,256], index: 1, kind: input, shape index: {}]
  %s2 = inlined_call_operand.vmem [shape: f32[1,256], index: 2, kind: input, shape index: {}]
  %s3 = inlined_call_operand.hbm [shape: f32[40,256], index: 3, kind: output, shape index: {}]
  %s4 = sld [smem:[#allocation0]]
  $region30: #{tpu_custom_call.1} parent=0
    _
  %s6 = ssub.s32 1, %s4
  %s7 = scalar_select 0, %s6, %s4
  $region1: #{tpu_custom_call.1} parent=0
    #allocation2 [shape = 'u8[40960]{0}', space=vmem, size = 0xa000, scoped, tag = 'input window, operand 0, single buffered']
    #allocation3 [shape = 's32[1]{0}', space=sflag, size = 0x4, scoped, tag = 'scoped memory for tpu_custom_call.1']
    #allocation4 [shape = 's32[1]{0}', space=sflag, size = 0x4, scoped, tag = 'scoped memory for tpu_custom_call.1']
    #allocation5 [shape = 'u8[262144]{0}', space=vmem, size = 0x40000, scoped, tag = 'input window, operand 1, single buffered']
    #allocation6 [shape = 's32[1]{0}', space=sflag, size = 0x4, scoped, tag = 'scoped memory for tpu_custom_call.1']
    #allocation7 [shape = 'u8[40960]{0}', space=vmem, size = 0xa000, scoped, tag = 'output window, operand 0, single buffered']
    %8 = vsyncpa [#allocation3], 0
    %9 = vsyncpa [#allocation6], 0
    %10 = vsyncpa [#allocation4], 0
    // Predicated region
    $region2: #{tpu_custom_call.1} parent=1 // pred_check
      _
    $region3: #{tpu_custom_call.1} parent=1 // pred_check_branch
      %12 = sbr.rel (0) target = $region5
    $region4: #{tpu_custom_call.1} parent=1 // pred_region
      %s14 = ssub.s32 1280, 1280
      %15 = vsyncadd [#allocation3], %s14
      %s16 = sshll.u32 [#allocation2], 4
      %s17 = int_to_ptr.vmem [resolvable:$true] %s16
      %22 = dma.hbm_to_vmem [thread:$0]  %s0, 1280, %s17, [#allocation3], 256, 256, 16
    $region5: #{tpu_custom_call.1} parent=1 // pred_fallthru
      _
    // Predicated region
    $region6: #{tpu_custom_call.1} parent=1 // pred_check
      _
    $region7: #{tpu_custom_call.1} parent=1 // pred_check_branch
      %24 = sbr.rel (0) target = $region9
    $region8: #{tpu_custom_call.1} parent=1 // pred_region
      %s26 = ssub.s32 8192, 8192
      %27 = vsyncadd [#allocation6], %s26
      %s28 = sshll.u32 [#allocation5], 4
      %s29 = int_to_ptr.vmem [resolvable:$true] %s28
      %34 = dma.hbm_to_vmem [thread:$0]  %s1, 8192, %s29, [#allocation6], 256, 256, 16
    $region9: #{tpu_custom_call.1} parent=1 // pred_fallthru
      _
    // Predicated region
    $region10: #{tpu_custom_call.1} parent=1 // pred_check
      _
    $region11: #{tpu_custom_call.1} parent=1 // pred_check_branch
      %36 = sbr.rel (0) target = $region13
    $region12: #{tpu_custom_call.1} parent=1 // pred_region
      _
    $region13: #{tpu_custom_call.1} parent=1 // pred_fallthru
      _
    // Predicated region
    $region14: #{tpu_custom_call.1} parent=1 // pred_check
      _
    $region15: #{tpu_custom_call.1} parent=1 // pred_check_branch
      %38 = sbr.rel (0) target = $region17
    $region16: #{tpu_custom_call.1} parent=1 // pred_region
      %39 = dma.done [#allocation3], 1280
    $region17: #{tpu_custom_call.1} parent=1 // pred_fallthru
      _
    // Predicated region
    $region18: #{tpu_custom_call.1} parent=1 // pred_check
      _
    $region19: #{tpu_custom_call.1} parent=1 // pred_check_branch
      %41 = sbr.rel (0) target = $region21
    $region20: #{tpu_custom_call.1} parent=1 // pred_region
      %42 = dma.done [#allocation6], 8192
    $region21: #{tpu_custom_call.1} parent=1 // pred_fallthru
      _
    %v43 = vld [vmem:[#allocation2] sm:$0xff]
    %v44 = vld [vmem:[#allocation2 + $0x8] sm:$0xff]
    %v45 = vld [vmem:[#allocation2 + $0x10] sm:$0xff]
    %v46 = vld [vmem:[#allocation2 + $0x18] sm:$0xff]
    %v47 = vld [vmem:[#allocation2 + $0x20] sm:$0xff]
    %v48 = vld [vmem:[#allocation2 + $0x28] sm:$0xff]
    %v49 = vld [vmem:[#allocation2 + $0x30] sm:$0xff]
    %v50 = vld [vmem:[#allocation2 + $0x38] sm:$0xff]
    %v51 = vld [vmem:[#allocation2 + $0x40] sm:$0xff]
    %v52 = vld [vmem:[#allocation2 + $0x48] sm:$0xff]
    %v53 = vld [vmem:[#allocation5] sm:$0xff]
    %v54 = vld [vmem:[#allocation5 + $0x8] sm:$0xff]
    %v55 = vld [vmem:[#allocation5 + $0x10] sm:$0xff]
    %v56 = vld [vmem:[#allocation5 + $0x18] sm:$0xff]
    %v57 = vld [vmem:[#allocation5 + $0x20] sm:$0xff]
    %v58 = vld [vmem:[#allocation5 + $0x28] sm:$0xff]
    %v59 = vld [vmem:[#allocation5 + $0x30] sm:$0xff]
    %v60 = vld [vmem:[#allocation5 + $0x38] sm:$0xff]
    %v61 = vld [vmem:[#allocation5 + $0x40] sm:$0xff]
    %v62 = vld [vmem:[#allocation5 + $0x48] sm:$0xff]
    %v63 = vld [vmem:[#allocation5 + $0x50] sm:$0xff]
    %v64 = vld [vmem:[#allocation5 + $0x58] sm:$0xff]
    %v65 = vld [vmem:[#allocation5 + $0x60] sm:$0xff]
    %v66 = vld [vmem:[#allocation5 + $0x68] sm:$0xff]
    %v67 = vld [vmem:[#allocation5 + $0x70] sm:$0xff]
    %v68 = vld [vmem:[#allocation5 + $0x78] sm:$0xff]
    %v69 = vld [vmem:[#allocation5 + $0x80] sm:$0xff]
    %v70 = vld [vmem:[#allocation5 + $0x88] sm:$0xff]
    %v71 = vld [vmem:[#allocation5 + $0x90] sm:$0xff]
    %v72 = vld [vmem:[#allocation5 + $0x98] sm:$0xff]
    %v73 = vld [vmem:[#allocation5 + $0xa0] sm:$0xff]
    %v74 = vld [vmem:[#allocation5 + $0xa8] sm:$0xff]
    %v75 = vld [vmem:[#allocation5 + $0xb0] sm:$0xff]
    %v76 = vld [vmem:[#allocation5 + $0xb8] sm:$0xff]
    %v77 = vld [vmem:[#allocation5 + $0xc0] sm:$0xff]
    %v78 = vld [vmem:[#allocation5 + $0xc8] sm:$0xff]
    %v79 = vld [vmem:[#allocation5 + $0xd0] sm:$0xff]
    %v80 = vld [vmem:[#allocation5 + $0xd8] sm:$0xff]
    %v81 = vld [vmem:[#allocation5 + $0xe0] sm:$0xff]
    %v82 = vld [vmem:[#allocation5 + $0xe8] sm:$0xff]
    %v83 = vld [vmem:[#allocation5 + $0xf0] sm:$0xff]
    %v84 = vld [vmem:[#allocation5 + $0xf8] sm:$0xff]
    %v85 = vld [vmem:[#allocation5 + $0x100] sm:$0xff]
    %v86 = vld [vmem:[#allocation5 + $0x108] sm:$0xff]
    %v87 = vld [vmem:[#allocation5 + $0x110] sm:$0xff]
    %v88 = vld [vmem:[#allocation5 + $0x118] sm:$0xff]
    %v89 = vld [vmem:[#allocation5 + $0x120] sm:$0xff]
    %v90 = vld [vmem:[#allocation5 + $0x128] sm:$0xff]
    %v91 = vld [vmem:[#allocation5 + $0x130] sm:$0xff]
    %v92 = vld [vmem:[#allocation5 + $0x138] sm:$0xff]
    %v93 = vld [vmem:[#allocation5 + $0x140] sm:$0xff]
    %v94 = vld [vmem:[#allocation5 + $0x148] sm:$0xff]
    %v95 = vld [vmem:[#allocation5 + $0x150] sm:$0xff]
    %v96 = vld [vmem:[#allocation5 + $0x158] sm:$0xff]
    %v97 = vld [vmem:[#allocation5 + $0x160] sm:$0xff]
    %v98 = vld [vmem:[#allocation5 + $0x168] sm:$0xff]
    %v99 = vld [vmem:[#allocation5 + $0x170] sm:$0xff]
    %v100 = vld [vmem:[#allocation5 + $0x178] sm:$0xff]
    %v101 = vld [vmem:[#allocation5 + $0x180] sm:$0xff]
    %v102 = vld [vmem:[#allocation5 + $0x188] sm:$0xff]
    %v103 = vld [vmem:[#allocation5 + $0x190] sm:$0xff]
    %v104 = vld [vmem:[#allocation5 + $0x198] sm:$0xff]
    %v105 = vld [vmem:[#allocation5 + $0x1a0] sm:$0xff]
    %v106 = vld [vmem:[#allocation5 + $0x1a8] sm:$0xff]
    %v107 = vld [vmem:[#allocation5 + $0x1b0] sm:$0xff]
    %v108 = vld [vmem:[#allocation5 + $0x1b8] sm:$0xff]
    %v109 = vld [vmem:[#allocation5 + $0x1c0] sm:$0xff]
    %v110 = vld [vmem:[#allocation5 + $0x1c8] sm:$0xff]
    %v111 = vld [vmem:[#allocation5 + $0x1d0] sm:$0xff]
    %v112 = vld [vmem:[#allocation5 + $0x1d8] sm:$0xff]
    %v113 = vld [vmem:[#allocation5 + $0x1e0] sm:$0xff]
    %v114 = vld [vmem:[#allocation5 + $0x1e8] sm:$0xff]
    %v115 = vld [vmem:[#allocation5 + $0x1f0] sm:$0xff]
    %v116 = vld [vmem:[#allocation5 + $0x1f8] sm:$0xff]
    %v117 = vld [vmem:[%s2] sm:$0x3]
    %v119 = vlaneseq
    %v120 = vshrl.u32 %v119, 7
    %v121 = vsub.s32 0, %v120
    %v122 = vrot.slane %v117, %v121
    %v123 = vlaneseq
    %v124 = vshrl.u32 %v123, 7
    %v125 = vsub.s32 1, %v124
    %v126 = vrot.slane %v117, %v125
    %129 = vmatprep.subr.mxu0 %v54
    %130 = vmatpush1.msra.mxu0 %v53
    %131 = vmatprep.subr.mxu0 %v56
    %132 = vmatpush1.msra.mxu0 %v55
    %133 = vmatprep.subr.mxu0 %v58
    %134 = vmatpush1.msra.mxu0 %v57
    %135 = vmatprep.subr.mxu0 %v60
    %136 = vmatpush1.msra.mxu0 %v59
    %137 = vmatprep.subr.mxu0 %v62
    %138 = vmatpush1.msra.mxu0 %v61
    %139 = vmatprep.subr.mxu0 %v64
    %140 = vmatpush1.msra.mxu0 %v63
    %141 = vmatprep.subr.mxu0 %v66
    %142 = vmatpush1.msra.mxu0 %v65
    %143 = vmatprep.subr.mxu0 %v68
    %144 = vmatpush1.msra.mxu0 %v67
    %145 = vmatprep.subr.mxu0 %v70
    %146 = vmatpush1.msra.mxu0 %v69
    %147 = vmatprep.subr.mxu0 %v72
    %148 = vmatpush1.msra.mxu0 %v71
    %149 = vmatprep.subr.mxu0 %v74
    %150 = vmatpush1.msra.mxu0 %v73
    %151 = vmatprep.subr.mxu0 %v76
    %152 = vmatpush1.msra.mxu0 %v75
    %153 = vmatprep.subr.mxu0 %v78
    %154 = vmatpush1.msra.mxu0 %v77
    %155 = vmatprep.subr.mxu0 %v80
    %156 = vmatpush1.msra.mxu0 %v79
    %157 = vmatprep.subr.mxu0 %v82
    %158 = vmatpush1.msra.mxu0 %v81
    %159 = vmatprep.subr.mxu0 %v84
    %160 = vmatpush1.msra.mxu0 %v83
    %161 = vmatprep.subr.mxu0 %v86
    %162 = vmatpush1.msra.mxu0 %v85
    %163 = vmatprep.subr.mxu0 %v88
    %164 = vmatpush1.msra.mxu0 %v87
    %165 = vmatprep.subr.mxu0 %v90
    %166 = vmatpush1.msra.mxu0 %v89
    %167 = vmatprep.subr.mxu0 %v92
    %168 = vmatpush1.msra.mxu0 %v91
    %169 = vmatprep.subr.mxu0 %v94
    %170 = vmatpush1.msra.mxu0 %v93
    %171 = vmatprep.subr.mxu0 %v96
    %172 = vmatpush1.msra.mxu0 %v95
    %173 = vmatprep.subr.mxu0 %v98
    %174 = vmatpush1.msra.mxu0 %v97
    %175 = vmatprep.subr.mxu0 %v100
    %176 = vmatpush1.msra.mxu0 %v99
    %177 = vmatprep.subr.mxu0 %v102
    %178 = vmatpush1.msra.mxu0 %v101
    %179 = vmatprep.subr.mxu0 %v104
    %180 = vmatpush1.msra.mxu0 %v103
    %181 = vmatprep.subr.mxu0 %v106
    %182 = vmatpush1.msra.mxu0 %v105
    %183 = vmatprep.subr.mxu0 %v108
    %184 = vmatpush1.msra.mxu0 %v107
    %185 = vmatprep.subr.mxu0 %v110
    %186 = vmatpush1.msra.mxu0 %v109
    %187 = vmatprep.subr.mxu0 %v112
    %188 = vmatpush1.msra.mxu0 %v111
    %189 = vmatprep.subr.mxu0 %v114
    %190 = vmatpush1.msra.mxu0 %v113
    %191 = vmatprep.subr.mxu0 %v116
    %192 = vmatpush1.msra.mxu0 %v115
    %193 = vmatprep.mubr.f32.mxu0 %v44
    %194 = vmatmul.mubr.f32.gmra.mrb[0].mxu0 %v43
    %v195 = vpop.f32.mrb[0].mxu0
    %v196 = vadd.f32 %v122, %v195
    %v197 = vpop.f32.mrb[0].mxu0
    %v198 = vadd.f32 %v126, %v197
    %199 = vmatprep.mubr.f32.mxu0 %v46
    %200 = vmatmul.mubr.f32.gmra.mrb[0].mxu0 %v45
    %v201 = vpop.f32.mrb[0].mxu0
    %v202 = vadd.f32 %v122, %v201
    %v203 = vpop.f32.mrb[0].mxu0
    %v204 = vadd.f32 %v126, %v203
    %205 = vmatprep.mubr.f32.mxu0 %v48
    %206 = vmatmul.mubr.f32.gmra.mrb[0].mxu0 %v47
    %v207 = vpop.f32.mrb[0].mxu0
    %v208 = vadd.f32 %v122, %v207
    %v209 = vpop.f32.mrb[0].mxu0
    %v210 = vadd.f32 %v126, %v209
    %211 = vmatprep.mubr.f32.mxu0 %v50
    %212 = vmatmul.mubr.f32.gmra.mrb[0].mxu0 %v49
    %v213 = vpop.f32.mrb[0].mxu0
    %v214 = vadd.f32 %v122, %v213
    %v215 = vpop.f32.mrb[0].mxu0
    %v216 = vadd.f32 %v126, %v215
    %217 = vmatprep.mubr.f32.mxu0 %v52
    %218 = vmatmul.mubr.f32.gmra.mrb[0].mxu0 %v51
    %v219 = vpop.f32.mrb[0].mxu0
    %v220 = vadd.f32 %v122, %v219
    %v221 = vpop.f32.mrb[0].mxu0
    %v222 = vadd.f32 %v126, %v221
    %223 = vdwg.mxu0
    %224 = vst [vmem:[#allocation7] sm:$0xff] %v196
    %225 = vst [vmem:[#allocation7 + $0x8] sm:$0xff] %v198
    %226 = vst [vmem:[#allocation7 + $0x10] sm:$0xff] %v202
    %227 = vst [vmem:[#allocation7 + $0x18] sm:$0xff] %v204
    %228 = vst [vmem:[#allocation7 + $0x20] sm:$0xff] %v208
    %229 = vst [vmem:[#allocation7 + $0x28] sm:$0xff] %v210
    %230 = vst [vmem:[#allocation7 + $0x30] sm:$0xff] %v214
    %231 = vst [vmem:[#allocation7 + $0x38] sm:$0xff] %v216
    %232 = vst [vmem:[#allocation7 + $0x40] sm:$0xff] %v220
    %233 = vst [vmem:[#allocation7 + $0x48] sm:$0xff] %v222
    // Predicated region
    $region22: #{tpu_custom_call.1} parent=1 // pred_check
      _
    $region23: #{tpu_custom_call.1} parent=1 // pred_check_branch
      %235 = sbr.rel (0) target = $region25
    $region24: #{tpu_custom_call.1} parent=1 // pred_region
      %s237 = ssub.s32 1280, 1280
      %238 = vsyncadd [#allocation4], %s237
      %s239 = sshll.u32 [#allocation7], 4
      %s240 = int_to_ptr.vmem [resolvable:$true] %s239
      %245 = dma.vmem_to_hbm [thread:$0]  %s240, 1280, %s3, [#allocation4], 256, 256, 16
    $region25: #{tpu_custom_call.1} parent=1 // pred_fallthru
      _
    // Predicated region
    $region26: #{tpu_custom_call.1} parent=1 // pred_check
      _
    $region27: #{tpu_custom_call.1} parent=1 // pred_check_branch
      %247 = sbr.rel (0) target = $region29
    $region28: #{tpu_custom_call.1} parent=1 // pred_region
      %248 = dma.done [#allocation4], 1280
    $region29: #{tpu_custom_call.1} parent=1 // pred_fallthru
      _
    %249 = vsyncpa [#allocation3], 1
    %250 = vsyncpa [#allocation6], 1
    %251 = vsyncpa [#allocation4], 1

</llo_original>
